<compile_context>
chip_gen: v5e
topology: v5e:2x2
jax: 0.10.0
libtpu: 0.0.40
codegen_flags: <defaults>
</compile_context>

<pallas_src>
import functools
import math

import jax
import jax.numpy as jnp
from jax.experimental import pallas as pl
from jax.experimental.pallas import tpu as pltpu

_SLAB = 128  # lane-dense output slab: lane 0 = action index, lane 1 = log-prob


def _round_up(x, m):
    return ((x + m - 1) // m) * m


def _mac_actor_kernel(
    obs_ref, h0_ref, mask_ref, adj_ref,
    wb_ref, bb_ref,                       # self.base            : (ODp, H), (1, H)
    wc_ref, bc_ref,                       # MAC comm encoder     : (H, CP), (1, CP)
    wirm_ref, wizm_ref, winm_ref,         # GRU W_ih (msg rows)  : (CP, H) x3
    wirf_ref, wizf_ref, winf_ref,         # GRU W_ih (feat rows) : (H, H) x3
    whr_ref, whz_ref, whn_ref,            # GRU W_hh per gate    : (H, H) x3
    br_ref, bz_ref, bin_ref, bhn_ref,     # GRU biases           : (1, H) x4
    lng_ref, lnb_ref,                     # LayerNorm gamma/beta : (1, H)
    wa_ref, ba_ref,                       # ACT head             : (H, AP), (1, AP)
    slab_ref, hnew_ref,
    *, num_agents,
):
    f32 = jnp.float32
    bf16 = jnp.bfloat16

    obs = obs_ref[...]
    mask = mask_ref[...]

    # Hoist broadcastable parameters once (JAX does not CSE broadcast_in_dim).
    bb, bc = bb_ref[...], bc_ref[...]
    br, bz = br_ref[...], bz_ref[...]
    b_in, b_hn = bin_ref[...], bhn_ref[...]
    lng, lnb = lng_ref[...], lnb_ref[...]
    ba = ba_ref[...]

    # ---- self.base : nn.Linear(obs_dim, hidden) (no activation in forward) ----
    feat = jnp.dot(obs.astype(bf16), wb_ref[...], preferred_element_type=f32) + bb
    feat_b = feat.astype(bf16)

    # ---- MAC.default_forward : tanh(Linear(H -> comm_dim)) --------------------
    enc = jnp.tanh(jnp.dot(feat_b, wc_ref[...], preferred_element_type=f32) + bc)

    # ---- MAC.communicate : mean of the *other* agents' encodings --------------
    # adj is a per-tile block-diagonal 0/1 adjacency (same rollout thread, self
    # excluded); MXU does the exact segment sum, the 1/(A-1) scale is applied
    # on the VPU in f32.
    msgs = jnp.dot(adj_ref[...], enc, preferred_element_type=f32)
    msgs = msgs * f32(1.0 / max(num_agents - 1, 1))
    msgs_b = msgs.astype(bf16)

    # ---- RNNLayer : single-layer GRU step, hidden reset by masks --------------
    h = h0_ref[...] * mask
    h_b = h.astype(bf16)
    r = jax.nn.sigmoid(
        jnp.dot(msgs_b, wirm_ref[...], preferred_element_type=f32)
        + jnp.dot(feat_b, wirf_ref[...], preferred_element_type=f32)
        + jnp.dot(h_b, whr_ref[...], preferred_element_type=f32) + br)
    z = jax.nn.sigmoid(
        jnp.dot(msgs_b, wizm_ref[...], preferred_element_type=f32)
        + jnp.dot(feat_b, wizf_ref[...], preferred_element_type=f32)
        + jnp.dot(h_b, whz_ref[...], preferred_element_type=f32) + bz)
    gh_n = jnp.dot(h_b, whn_ref[...], preferred_element_type=f32) + b_hn
    n = jnp.tanh(
        jnp.dot(msgs_b, winm_ref[...], preferred_element_type=f32)
        + jnp.dot(feat_b, winf_ref[...], preferred_element_type=f32)
        + b_in + r * gh_n)
    hn = (1.0 - z) * n + z * h
    hnew_ref[...] = hn

    # ---- LayerNorm (eps = 1e-5, nn.LayerNorm default) --------------------------
    mu = jnp.mean(hn, axis=-1, keepdims=True)
    var = jnp.mean((hn - mu) * (hn - mu), axis=-1, keepdims=True)
    x = (hn - mu) * jax.lax.rsqrt(var + 1e-5) * lng + lnb

    # ---- ACTLayer (Categorical), deterministic -> mode + log-prob --------------
    # Padded action lanes carry a -1e30 bias so they never win the max and
    # contribute ~0 to the logsumexp.
    logits = jnp.dot(x.astype(bf16), wa_ref[...], preferred_element_type=f32) + ba
    m = jnp.max(logits, axis=-1, keepdims=True)
    ap = logits.shape[-1]
    ids = jax.lax.broadcasted_iota(jnp.int32, logits.shape, 1).astype(f32)
    # first index achieving the max (matches torch argmax tie-break)
    idx = jnp.min(jnp.where(logits == m, ids, f32(ap)), axis=-1, keepdims=True)
    lp = -jnp.log(jnp.sum(jnp.exp(logits - m), axis=-1, keepdims=True))

    # Lane-dense output slab: lane 0 = action (as float), lane 1 = log-prob.
    lane = jax.lax.broadcasted_iota(jnp.int32, slab_ref.shape, 1)
    slab_ref[...] = jnp.where(lane == 0, idx, jnp.where(lane == 1, lp, f32(0.0)))


def init_params(key, obs_dim, hidden, comm_dim, act_dim):
    ks = jax.random.split(key, 5)
    s = 0.1
    return dict(
        wb=jax.random.normal(ks[0], (obs_dim, hidden), jnp.float32) * s,
        bb=jnp.zeros((1, hidden), jnp.float32),
        wc=jax.random.normal(ks[1], (hidden, comm_dim), jnp.float32) * s,
        bc=jnp.zeros((1, comm_dim), jnp.float32),
        wih=jax.random.normal(ks[2], (comm_dim + hidden, 3 * hidden), jnp.float32) * s,
        bih=jnp.zeros((1, 3 * hidden), jnp.float32),
        whh=jax.random.normal(ks[3], (hidden, 3 * hidden), jnp.float32) * s,
        bhh=jnp.zeros((1, 3 * hidden), jnp.float32),
        lng=jnp.ones((1, hidden), jnp.float32),
        lnb=jnp.zeros((1, hidden), jnp.float32),
        wa=jax.random.normal(ks[4], (hidden, act_dim), jnp.float32) * s,
        ba=jnp.zeros((1, act_dim), jnp.float32),
    )


def mac_r_actor_forward(params, obs, rnn_states, masks, num_agents):
    f32, bf16 = jnp.float32, jnp.bfloat16
    B, obs_dim = obs.shape
    H = params["wb"].shape[1]
    C = params["wc"].shape[1]
    A = params["wa"].shape[1]
    # Batch must be laid out agent-innermost: row = thread * num_agents + agent.
    assert B % num_agents == 0, "batch must be n_rollout_threads * num_agents"

    ODp = _round_up(obs_dim, 128)   # lane/tile-friendly contraction dim
    CP = _round_up(C, 128)          # lane-dense comm encoding / messages
    AP = _round_up(A, 128)          # lane-dense logits

    # ---- weights: pad, split per GRU gate, cast matmul operands to bf16 -------
    wb = jnp.pad(params["wb"], ((0, ODp - obs_dim), (0, 0))).astype(bf16)
    bb = params["bb"].astype(f32)
    wc = jnp.pad(params["wc"], ((0, 0), (0, CP - C))).astype(bf16)
    bc = jnp.pad(params["bc"], ((0, 0), (0, CP - C))).astype(f32)

    wih, whh = params["wih"], params["whh"]           # (C+H, 3H), (H, 3H)
    wi_m = jnp.pad(wih[:C], ((0, CP - C), (0, 0)))    # message rows -> (CP, 3H)
    wi_f = wih[C:]                                    # feature rows -> (H, 3H)

    def gate(w, k):
        return w[:, k * H:(k + 1) * H]

    wirm, wizm, winm = (gate(wi_m, k).astype(bf16) for k in range(3))
    wirf, wizf, winf = (gate(wi_f, k).astype(bf16) for k in range(3))
    whr, whz, whn = (gate(whh, k).astype(bf16) for k in range(3))
    bih, bhh = params["bih"], params["bhh"]
    br = (gate(bih, 0) + gate(bhh, 0)).astype(f32)    # b_ir + b_hr
    bz = (gate(bih, 1) + gate(bhh, 1)).astype(f32)    # b_iz + b_hz
    bi_n = gate(bih, 2).astype(f32)
    bh_n = gate(bhh, 2).astype(f32)

    lng, lnb = params["lng"].astype(f32), params["lnb"].astype(f32)
    wa = jnp.pad(params["wa"], ((0, 0), (0, AP - A))).astype(bf16)
    ba = jnp.pad(params["ba"], ((0, 0), (0, AP - A)),
                 constant_values=-1e30).astype(f32)

    # ---- batch tiling: tile is a multiple of 8 sublanes AND of num_agents -----
    base = math.lcm(8, num_agents)
    TB = min(_round_up(B, base), _round_up(256, base))
    Bp = _round_up(B, TB)
    pad_rows = Bp - B

    obs_p = jnp.pad(obs.astype(f32), ((0, pad_rows), (0, ODp - obs_dim)))
    h0_p = jnp.pad(rnn_states[:, 0, :].astype(f32), ((0, pad_rows), (0, 0)))
    mask_p = jnp.pad(masks.astype(f32), ((0, pad_rows), (0, 0)))

    # Per-tile block-diagonal adjacency (same thread, excluding self). Bounded
    # (TB x TB) and VMEM-resident; identical for every tile because TB is a
    # multiple of num_agents, so no thread straddles a tile boundary.
    adj = jnp.kron(
        jnp.eye(TB // num_agents, dtype=f32),
        jnp.ones((num_agents, num_agents), f32) - jnp.eye(num_agents, dtype=f32))

    weights = (wb, bb, wc, bc, wirm, wizm, winm, wirf, wizf, winf,
               whr, whz, whn, br, bz, bi_n, bh_n, lng, lnb, wa, ba)

    def rows(width):
        return pl.BlockSpec((TB, width), lambda i: (i, 0))

    def resident(x):
        return pl.BlockSpec(x.shape, lambda i: (0, 0))   # VMEM-resident across grid

    in_specs = ([rows(ODp), rows(H), rows(1), resident(adj)]
                + [resident(w) for w in weights])
    out_specs = (rows(_SLAB), rows(H))
    out_shape = (jax.ShapeDtypeStruct((Bp, _SLAB), f32),
                 jax.ShapeDtypeStruct((Bp, H), f32))

    kernel = functools.partial(_mac_actor_kernel, num_agents=num_agents)
    slab, h_new = pl.pallas_call(
        kernel,
        grid=(Bp // TB,),
        in_specs=in_specs,
        out_specs=out_specs,
        out_shape=out_shape,
        compiler_params=pltpu.CompilerParams(
            dimension_semantics=("parallel",)),
    )(obs_p, h0_p, mask_p, adj, *weights)

    actions = slab[:B, 0:1].astype(jnp.int32)
    action_log_probs = slab[:B, 1:2]
    return actions, action_log_probs, h_new[:B].reshape(B, 1, H)


def reference_forward(params, obs, rnn_states, masks, num_agents):
    """Pure-JAX reference mirroring the kernel math (bf16 matmul operands)."""
    f32, bf16 = jnp.float32, jnp.bfloat16
    B = obs.shape[0]
    H = params["wb"].shape[1]

    def mm(a, w):
        return jnp.dot(a.astype(bf16), w.astype(bf16), preferred_element_type=f32)

    feat = mm(obs, params["wb"]) + params["bb"]
    enc = jnp.tanh(mm(feat, params["wc"]) + params["bc"])
    adj = jnp.kron(jnp.eye(B // num_agents, dtype=f32),
                   jnp.ones((num_agents, num_agents), f32) - jnp.eye(num_agents, dtype=f32))
    msgs = jnp.dot(adj, enc, preferred_element_type=f32) * (1.0 / max(num_agents - 1, 1))
    x = jnp.concatenate([msgs, feat], -1)
    h = rnn_states[:, 0, :] * masks
    gi = mm(x, params["wih"]) + params["bih"]
    gh = mm(h, params["whh"]) + params["bhh"]
    r = jax.nn.sigmoid(gi[:, :H] + gh[:, :H])
    z = jax.nn.sigmoid(gi[:, H:2 * H] + gh[:, H:2 * H])
    n = jnp.tanh(gi[:, 2 * H:] + r * gh[:, 2 * H:])
    hn = (1.0 - z) * n + z * h
    mu = hn.mean(-1, keepdims=True)
    var = ((hn - mu) ** 2).mean(-1, keepdims=True)
    xo = (hn - mu) / jnp.sqrt(var + 1e-5) * params["lng"] + params["lnb"]
    logits = mm(xo, params["wa"]) + params["ba"]
    act = jnp.argmax(logits, -1, keepdims=True)
    lp = jnp.take_along_axis(jax.nn.log_softmax(logits, -1), act, axis=-1)
    return act.astype(jnp.int32), lp, hn.reshape(B, 1, H)


if __name__ == "__main__":
    num_agents = 4
    n_threads = 2
    B = n_threads * num_agents          # 8, agent-innermost layout
    obs_dim = 12
    hidden = 32
    comm_dim = 8
    act_dim = 5
    recurrent_N = 1

    key = jax.random.PRNGKey(0)
    kp, ko, kh = jax.random.split(key, 3)
    params = init_params(kp, obs_dim, hidden, comm_dim, act_dim)

    obs = jax.random.normal(ko, (B, obs_dim), jnp.float32)
    rnn_states = jax.random.normal(kh, (B, recurrent_N, hidden), jnp.float32)
    masks = jnp.ones((B, 1), jnp.float32).at[3, 0].set(0.0)

    actions, log_probs, new_rnn_states = mac_r_actor_forward(
        params, obs, rnn_states, masks, num_agents)
    jax.block_until_ready((actions, log_probs, new_rnn_states))

    ref_a, ref_lp, ref_h = reference_forward(params, obs, rnn_states, masks, num_agents)
    assert actions.shape == (B, 1) and actions.dtype == jnp.int32
    assert log_probs.shape == (B, 1)
    assert new_rnn_states.shape == (B, recurrent_N, hidden)
    assert bool(jnp.all(actions == ref_a))
    assert bool(jnp.allclose(log_probs, ref_lp, atol=1e-3, rtol=1e-3))
    assert bool(jnp.allclose(new_rnn_states, ref_h, atol=1e-3, rtol=1e-3))

    print("KERNEL_OK")
</pallas_src>

<mosaic_0001>
module attributes {stable_mosaic.version = 11 : i64} {
  func.func @_mac_actor_kernel(%arg0: i32, %arg1: memref<8x128xf32, #tpu.memory_space<vmem>>, %arg2: memref<8x32xf32, #tpu.memory_space<vmem>>, %arg3: memref<8x1xf32, #tpu.memory_space<vmem>>, %arg4: memref<8x8xf32, #tpu.memory_space<vmem>>, %arg5: memref<128x32xbf16, #tpu.memory_space<vmem>>, %arg6: memref<1x32xf32, #tpu.memory_space<vmem>>, %arg7: memref<32x128xbf16, #tpu.memory_space<vmem>>, %arg8: memref<1x128xf32, #tpu.memory_space<vmem>>, %arg9: memref<128x32xbf16, #tpu.memory_space<vmem>>, %arg10: memref<128x32xbf16, #tpu.memory_space<vmem>>, %arg11: memref<128x32xbf16, #tpu.memory_space<vmem>>, %arg12: memref<32x32xbf16, #tpu.memory_space<vmem>>, %arg13: memref<32x32xbf16, #tpu.memory_space<vmem>>, %arg14: memref<32x32xbf16, #tpu.memory_space<vmem>>, %arg15: memref<32x32xbf16, #tpu.memory_space<vmem>>, %arg16: memref<32x32xbf16, #tpu.memory_space<vmem>>, %arg17: memref<32x32xbf16, #tpu.memory_space<vmem>>, %arg18: memref<1x32xf32, #tpu.memory_space<vmem>>, %arg19: memref<1x32xf32, #tpu.memory_space<vmem>>, %arg20: memref<1x32xf32, #tpu.memory_space<vmem>>, %arg21: memref<1x32xf32, #tpu.memory_space<vmem>>, %arg22: memref<1x32xf32, #tpu.memory_space<vmem>>, %arg23: memref<1x32xf32, #tpu.memory_space<vmem>>, %arg24: memref<32x128xbf16, #tpu.memory_space<vmem>>, %arg25: memref<1x128xf32, #tpu.memory_space<vmem>>, %arg26: memref<8x128xf32, #tpu.memory_space<vmem>>, %arg27: memref<8x32xf32, #tpu.memory_space<vmem>>) attributes {dimension_semantics = [#tpu.dimension_semantics<parallel>], iteration_bounds = array<i64: 1>, scalar_prefetch = 0 : i64, scratch_operands = 0 : i64, tpu.core_type = #tpu.core_type<tc>, window_params = [{transform_indices = @transform_0, window_bounds = array<i64: 8, 128>}, {transform_indices = @transform_1, window_bounds = array<i64: 8, 32>}, {transform_indices = @transform_2, window_bounds = array<i64: 8, 1>}, {pipeline_mode = #tpu.pipeline_mode<synchronous>, transform_indices = @transform_3, window_bounds = array<i64: 8, 8>}, {pipeline_mode = #tpu.pipeline_mode<synchronous>, transform_indices = @transform_4, window_bounds = array<i64: 128, 32>}, {pipeline_mode = #tpu.pipeline_mode<synchronous>, transform_indices = @transform_5, window_bounds = array<i64: 1, 32>}, {pipeline_mode = #tpu.pipeline_mode<synchronous>, transform_indices = @transform_6, window_bounds = array<i64: 32, 128>}, {pipeline_mode = #tpu.pipeline_mode<synchronous>, transform_indices = @transform_7, window_bounds = array<i64: 1, 128>}, {pipeline_mode = #tpu.pipeline_mode<synchronous>, transform_indices = @transform_8, window_bounds = array<i64: 128, 32>}, {pipeline_mode = #tpu.pipeline_mode<synchronous>, transform_indices = @transform_9, window_bounds = array<i64: 128, 32>}, {pipeline_mode = #tpu.pipeline_mode<synchronous>, transform_indices = @transform_10, window_bounds = array<i64: 128, 32>}, {pipeline_mode = #tpu.pipeline_mode<synchronous>, transform_indices = @transform_11, window_bounds = array<i64: 32, 32>}, {pipeline_mode = #tpu.pipeline_mode<synchronous>, transform_indices = @transform_12, window_bounds = array<i64: 32, 32>}, {pipeline_mode = #tpu.pipeline_mode<synchronous>, transform_indices = @transform_13, window_bounds = array<i64: 32, 32>}, {pipeline_mode = #tpu.pipeline_mode<synchronous>, transform_indices = @transform_14, window_bounds = array<i64: 32, 32>}, {pipeline_mode = #tpu.pipeline_mode<synchronous>, transform_indices = @transform_15, window_bounds = array<i64: 32, 32>}, {pipeline_mode = #tpu.pipeline_mode<synchronous>, transform_indices = @transform_16, window_bounds = array<i64: 32, 32>}, {pipeline_mode = #tpu.pipeline_mode<synchronous>, transform_indices = @transform_17, window_bounds = array<i64: 1, 32>}, {pipeline_mode = #tpu.pipeline_mode<synchronous>, transform_indices = @transform_18, window_bounds = array<i64: 1, 32>}, {pipeline_mode = #tpu.pipeline_mode<synchronous>, transform_indices = @transform_19, window_bounds = array<i64: 1, 32>}, {pipeline_mode = #tpu.pipeline_mode<synchronous>, transform_indices = @transform_20, window_bounds = array<i64: 1, 32>}, {pipeline_mode = #tpu.pipeline_mode<synchronous>, transform_indices = @transform_21, window_bounds = array<i64: 1, 32>}, {pipeline_mode = #tpu.pipeline_mode<synchronous>, transform_indices = @transform_22, window_bounds = array<i64: 1, 32>}, {pipeline_mode = #tpu.pipeline_mode<synchronous>, transform_indices = @transform_23, window_bounds = array<i64: 32, 128>}, {pipeline_mode = #tpu.pipeline_mode<synchronous>, transform_indices = @transform_24, window_bounds = array<i64: 1, 128>}, {transform_indices = @transform_25, window_bounds = array<i64: 8, 128>}, {transform_indices = @transform_26, window_bounds = array<i64: 8, 32>}]} {
    %c0 = arith.constant 0 : index
    %c0_0 = arith.constant 0 : index
    %0 = vector.load %arg1[%c0, %c0_0] : memref<8x128xf32, #tpu.memory_space<vmem>>, vector<8x128xf32>
    %c0_1 = arith.constant 0 : index
    %c0_2 = arith.constant 0 : index
    %1 = vector.load %arg3[%c0_1, %c0_2] : memref<8x1xf32, #tpu.memory_space<vmem>>, vector<8x1xf32>
    %c0_3 = arith.constant 0 : index
    %c0_4 = arith.constant 0 : index
    %2 = vector.load %arg6[%c0_3, %c0_4] : memref<1x32xf32, #tpu.memory_space<vmem>>, vector<1x32xf32>
    %c0_5 = arith.constant 0 : index
    %c0_6 = arith.constant 0 : index
    %3 = vector.load %arg8[%c0_5, %c0_6] : memref<1x128xf32, #tpu.memory_space<vmem>>, vector<1x128xf32>
    %c0_7 = arith.constant 0 : index
    %c0_8 = arith.constant 0 : index
    %4 = vector.load %arg18[%c0_7, %c0_8] : memref<1x32xf32, #tpu.memory_space<vmem>>, vector<1x32xf32>
    %c0_9 = arith.constant 0 : index
    %c0_10 = arith.constant 0 : index
    %5 = vector.load %arg19[%c0_9, %c0_10] : memref<1x32xf32, #tpu.memory_space<vmem>>, vector<1x32xf32>
    %c0_11 = arith.constant 0 : index
    %c0_12 = arith.constant 0 : index
    %6 = vector.load %arg20[%c0_11, %c0_12] : memref<1x32xf32, #tpu.memory_space<vmem>>, vector<1x32xf32>
    %c0_13 = arith.constant 0 : index
    %c0_14 = arith.constant 0 : index
    %7 = vector.load %arg21[%c0_13, %c0_14] : memref<1x32xf32, #tpu.memory_space<vmem>>, vector<1x32xf32>
    %c0_15 = arith.constant 0 : index
    %c0_16 = arith.constant 0 : index
    %8 = vector.load %arg22[%c0_15, %c0_16] : memref<1x32xf32, #tpu.memory_space<vmem>>, vector<1x32xf32>
    %c0_17 = arith.constant 0 : index
    %c0_18 = arith.constant 0 : index
    %9 = vector.load %arg23[%c0_17, %c0_18] : memref<1x32xf32, #tpu.memory_space<vmem>>, vector<1x32xf32>
    %c0_19 = arith.constant 0 : index
    %c0_20 = arith.constant 0 : index
    %10 = vector.load %arg25[%c0_19, %c0_20] : memref<1x128xf32, #tpu.memory_space<vmem>>, vector<1x128xf32>
    %11 = arith.truncf %0 : vector<8x128xf32> to vector<8x128xbf16>
    %c0_21 = arith.constant 0 : index
    %c0_22 = arith.constant 0 : index
    %12 = vector.load %arg5[%c0_21, %c0_22] : memref<128x32xbf16, #tpu.memory_space<vmem>>, vector<128x32xbf16>
    %cst = arith.constant dense<0.000000e+00> : vector<8x32xf32>
    %13 = tpu.matmul %11, %12, %cst {dimension_numbers = #tpu.dot_dimension_numbers<[1], [0], [0], [1], [0, 0, 1, 1], [], []>} : vector<8x128xbf16>, vector<128x32xbf16>, vector<8x32xf32> -> vector<8x32xf32>
    %14 = vector.broadcast %2 : vector<1x32xf32> to vector<8x32xf32>
    %15 = arith.addf %13, %14 : vector<8x32xf32>
    %16 = arith.truncf %15 : vector<8x32xf32> to vector<8x32xbf16>
    %c0_23 = arith.constant 0 : index
    %c0_24 = arith.constant 0 : index
    %17 = vector.load %arg7[%c0_23, %c0_24] : memref<32x128xbf16, #tpu.memory_space<vmem>>, vector<32x128xbf16>
    %cst_25 = arith.constant dense<0.000000e+00> : vector<8x128xf32>
    %18 = tpu.matmul %16, %17, %cst_25 {dimension_numbers = #tpu.dot_dimension_numbers<[1], [0], [0], [1], [0, 0, 1, 1], [], []>} : vector<8x32xbf16>, vector<32x128xbf16>, vector<8x128xf32> -> vector<8x128xf32>
    %19 = vector.broadcast %3 : vector<1x128xf32> to vector<8x128xf32>
    %20 = arith.addf %18, %19 : vector<8x128xf32>
    %21 = math.tanh %20 : vector<8x128xf32>
    %c0_26 = arith.constant 0 : index
    %c0_27 = arith.constant 0 : index
    %22 = vector.load %arg4[%c0_26, %c0_27] : memref<8x8xf32, #tpu.memory_space<vmem>>, vector<8x8xf32>
    %cst_28 = arith.constant dense<0.000000e+00> : vector<8x128xf32>
    %23 = tpu.matmul %22, %21, %cst_28 {dimension_numbers = #tpu.dot_dimension_numbers<[1], [0], [0], [1], [0, 0, 1, 1], [], []>} : vector<8x8xf32>, vector<8x128xf32>, vector<8x128xf32> -> vector<8x128xf32>
    %cst_29 = arith.constant 0.333333343 : f32
    %24 = vector.broadcast %cst_29 : f32 to vector<8x128xf32>
    %25 = arith.mulf %23, %24 : vector<8x128xf32>
    %26 = arith.truncf %25 : vector<8x128xf32> to vector<8x128xbf16>
    %c0_30 = arith.constant 0 : index
    %c0_31 = arith.constant 0 : index
    %27 = vector.load %arg2[%c0_30, %c0_31] : memref<8x32xf32, #tpu.memory_space<vmem>>, vector<8x32xf32>
    %28 = vector.broadcast %1 : vector<8x1xf32> to vector<8x32xf32>
    %29 = arith.mulf %27, %28 : vector<8x32xf32>
    %30 = arith.truncf %29 : vector<8x32xf32> to vector<8x32xbf16>
    %c0_32 = arith.constant 0 : index
    %c0_33 = arith.constant 0 : index
    %31 = vector.load %arg9[%c0_32, %c0_33] : memref<128x32xbf16, #tpu.memory_space<vmem>>, vector<128x32xbf16>
    %cst_34 = arith.constant dense<0.000000e+00> : vector<8x32xf32>
    %32 = tpu.matmul %26, %31, %cst_34 {dimension_numbers = #tpu.dot_dimension_numbers<[1], [0], [0], [1], [0, 0, 1, 1], [], []>} : vector<8x128xbf16>, vector<128x32xbf16>, vector<8x32xf32> -> vector<8x32xf32>
    %c0_35 = arith.constant 0 : index
    %c0_36 = arith.constant 0 : index
    %33 = vector.load %arg12[%c0_35, %c0_36] : memref<32x32xbf16, #tpu.memory_space<vmem>>, vector<32x32xbf16>
    %cst_37 = arith.constant dense<0.000000e+00> : vector<8x32xf32>
    %34 = tpu.matmul %16, %33, %cst_37 {dimension_numbers = #tpu.dot_dimension_numbers<[1], [0], [0], [1], [0, 0, 1, 1], [], []>} : vector<8x32xbf16>, vector<32x32xbf16>, vector<8x32xf32> -> vector<8x32xf32>
    %35 = arith.addf %32, %34 : vector<8x32xf32>
    %c0_38 = arith.constant 0 : index
    %c0_39 = arith.constant 0 : index
    %36 = vector.load %arg15[%c0_38, %c0_39] : memref<32x32xbf16, #tpu.memory_space<vmem>>, vector<32x32xbf16>
    %cst_40 = arith.constant dense<0.000000e+00> : vector<8x32xf32>
    %37 = tpu.matmul %30, %36, %cst_40 {dimension_numbers = #tpu.dot_dimension_numbers<[1], [0], [0], [1], [0, 0, 1, 1], [], []>} : vector<8x32xbf16>, vector<32x32xbf16>, vector<8x32xf32> -> vector<8x32xf32>
    %38 = arith.addf %35, %37 : vector<8x32xf32>
    %39 = vector.broadcast %4 : vector<1x32xf32> to vector<8x32xf32>
    %40 = arith.addf %38, %39 : vector<8x32xf32>
    %41 = arith.negf %40 : vector<8x32xf32>
    %42 = math.exp %41 : vector<8x32xf32>
    %cst_41 = arith.constant 1.000000e+00 : f32
    %43 = vector.broadcast %cst_41 : f32 to vector<8x32xf32>
    %44 = arith.addf %43, %42 : vector<8x32xf32>
    %45 = arith.divf %43, %44 : vector<8x32xf32>
    %c0_42 = arith.constant 0 : index
    %c0_43 = arith.constant 0 : index
    %46 = vector.load %arg10[%c0_42, %c0_43] : memref<128x32xbf16, #tpu.memory_space<vmem>>, vector<128x32xbf16>
    %cst_44 = arith.constant dense<0.000000e+00> : vector<8x32xf32>
    %47 = tpu.matmul %26, %46, %cst_44 {dimension_numbers = #tpu.dot_dimension_numbers<[1], [0], [0], [1], [0, 0, 1, 1], [], []>} : vector<8x128xbf16>, vector<128x32xbf16>, vector<8x32xf32> -> vector<8x32xf32>
    %c0_45 = arith.constant 0 : index
    %c0_46 = arith.constant 0 : index
    %48 = vector.load %arg13[%c0_45, %c0_46] : memref<32x32xbf16, #tpu.memory_space<vmem>>, vector<32x32xbf16>
    %cst_47 = arith.constant dense<0.000000e+00> : vector<8x32xf32>
    %49 = tpu.matmul %16, %48, %cst_47 {dimension_numbers = #tpu.dot_dimension_numbers<[1], [0], [0], [1], [0, 0, 1, 1], [], []>} : vector<8x32xbf16>, vector<32x32xbf16>, vector<8x32xf32> -> vector<8x32xf32>
    %50 = arith.addf %47, %49 : vector<8x32xf32>
    %c0_48 = arith.constant 0 : index
    %c0_49 = arith.constant 0 : index
    %51 = vector.load %arg16[%c0_48, %c0_49] : memref<32x32xbf16, #tpu.memory_space<vmem>>, vector<32x32xbf16>
    %cst_50 = arith.constant dense<0.000000e+00> : vector<8x32xf32>
    %52 = tpu.matmul %30, %51, %cst_50 {dimension_numbers = #tpu.dot_dimension_numbers<[1], [0], [0], [1], [0, 0, 1, 1], [], []>} : vector<8x32xbf16>, vector<32x32xbf16>, vector<8x32xf32> -> vector<8x32xf32>
    %53 = arith.addf %50, %52 : vector<8x32xf32>
    %54 = vector.broadcast %5 : vector<1x32xf32> to vector<8x32xf32>
    %55 = arith.addf %53, %54 : vector<8x32xf32>
    %56 = arith.negf %55 : vector<8x32xf32>
    %57 = math.exp %56 : vector<8x32xf32>
    %cst_51 = arith.constant 1.000000e+00 : f32
    %58 = vector.broadcast %cst_51 : f32 to vector<8x32xf32>
    %59 = arith.addf %58, %57 : vector<8x32xf32>
    %60 = arith.divf %58, %59 : vector<8x32xf32>
    %c0_52 = arith.constant 0 : index
    %c0_53 = arith.constant 0 : index
    %61 = vector.load %arg17[%c0_52, %c0_53] : memref<32x32xbf16, #tpu.memory_space<vmem>>, vector<32x32xbf16>
    %cst_54 = arith.constant dense<0.000000e+00> : vector<8x32xf32>
    %62 = tpu.matmul %30, %61, %cst_54 {dimension_numbers = #tpu.dot_dimension_numbers<[1], [0], [0], [1], [0, 0, 1, 1], [], []>} : vector<8x32xbf16>, vector<32x32xbf16>, vector<8x32xf32> -> vector<8x32xf32>
    %63 = vector.broadcast %7 : vector<1x32xf32> to vector<8x32xf32>
    %64 = arith.addf %62, %63 : vector<8x32xf32>
    %c0_55 = arith.constant 0 : index
    %c0_56 = arith.constant 0 : index
    %65 = vector.load %arg11[%c0_55, %c0_56] : memref<128x32xbf16, #tpu.memory_space<vmem>>, vector<128x32xbf16>
    %cst_57 = arith.constant dense<0.000000e+00> : vector<8x32xf32>
    %66 = tpu.matmul %26, %65, %cst_57 {dimension_numbers = #tpu.dot_dimension_numbers<[1], [0], [0], [1], [0, 0, 1, 1], [], []>} : vector<8x128xbf16>, vector<128x32xbf16>, vector<8x32xf32> -> vector<8x32xf32>
    %c0_58 = arith.constant 0 : index
    %c0_59 = arith.constant 0 : index
    %67 = vector.load %arg14[%c0_58, %c0_59] : memref<32x32xbf16, #tpu.memory_space<vmem>>, vector<32x32xbf16>
    %cst_60 = arith.constant dense<0.000000e+00> : vector<8x32xf32>
    %68 = tpu.matmul %16, %67, %cst_60 {dimension_numbers = #tpu.dot_dimension_numbers<[1], [0], [0], [1], [0, 0, 1, 1], [], []>} : vector<8x32xbf16>, vector<32x32xbf16>, vector<8x32xf32> -> vector<8x32xf32>
    %69 = arith.addf %66, %68 : vector<8x32xf32>
    %70 = vector.broadcast %6 : vector<1x32xf32> to vector<8x32xf32>
    %71 = arith.addf %69, %70 : vector<8x32xf32>
    %72 = arith.mulf %45, %64 : vector<8x32xf32>
    %73 = arith.addf %71, %72 : vector<8x32xf32>
    %74 = math.tanh %73 : vector<8x32xf32>
    %cst_61 = arith.constant 1.000000e+00 : f32
    %75 = vector.broadcast %cst_61 : f32 to vector<8x32xf32>
    %76 = arith.subf %75, %60 : vector<8x32xf32>
    %77 = arith.mulf %76, %74 : vector<8x32xf32>
    %78 = arith.mulf %60, %29 : vector<8x32xf32>
    %79 = arith.addf %77, %78 : vector<8x32xf32>
    %c0_62 = arith.constant 0 : index
    %c0_63 = arith.constant 0 : index
    %80 = vector.load %arg27[%c0_62, %c0_63] : memref<8x32xf32, #tpu.memory_space<vmem>>, vector<8x32xf32>
    tpu.vector_store %arg27[%c0_62, %c0_63], %79 {strides = array<i32>} : memref<8x32xf32, #tpu.memory_space<vmem>>, vector<8x32xf32>,
    %cst_64 = arith.constant dense<0.000000e+00> : vector<8xf32>
    %81 = vector.multi_reduction <add>, %79, %cst_64 [1] : vector<8x32xf32> to vector<8xf32>
    %82 = vector.shape_cast %81 : vector<8xf32> to vector<8x1xf32>
    %cst_65 = arith.constant 3.200000e+01 : f32
    %83 = vector.broadcast %cst_65 : f32 to vector<8x1xf32>
    %84 = arith.divf %82, %83 : vector<8x1xf32>
    %85 = vector.broadcast %84 : vector<8x1xf32> to vector<8x32xf32>
    %86 = arith.subf %79, %85 : vector<8x32xf32>
    %87 = vector.broadcast %84 : vector<8x1xf32> to vector<8x32xf32>
    %88 = arith.subf %79, %87 : vector<8x32xf32>
    %89 = arith.mulf %86, %88 : vector<8x32xf32>
    %cst_66 = arith.constant dense<0.000000e+00> : vector<8xf32>
    %90 = vector.multi_reduction <add>, %89, %cst_66 [1] : vector<8x32xf32> to vector<8xf32>
    %91 = vector.shape_cast %90 : vector<8xf32> to vector<8x1xf32>
    %cst_67 = arith.constant 3.200000e+01 : f32
    %92 = vector.broadcast %cst_67 : f32 to vector<8x1xf32>
    %93 = arith.divf %91, %92 : vector<8x1xf32>
    %94 = vector.broadcast %84 : vector<8x1xf32> to vector<8x32xf32>
    %95 = arith.subf %79, %94 : vector<8x32xf32>
    %cst_68 = arith.constant 9.99999974E-6 : f32
    %96 = vector.broadcast %cst_68 : f32 to vector<8x1xf32>
    %97 = arith.addf %93, %96 : vector<8x1xf32>
    %98 = math.rsqrt %97 : vector<8x1xf32>
    %99 = vector.broadcast %98 : vector<8x1xf32> to vector<8x32xf32>
    %100 = arith.mulf %95, %99 : vector<8x32xf32>
    %101 = vector.broadcast %8 : vector<1x32xf32> to vector<8x32xf32>
    %102 = arith.mulf %100, %101 : vector<8x32xf32>
    %103 = vector.broadcast %9 : vector<1x32xf32> to vector<8x32xf32>
    %104 = arith.addf %102, %103 : vector<8x32xf32>
    %105 = arith.truncf %104 : vector<8x32xf32> to vector<8x32xbf16>
    %c0_69 = arith.constant 0 : index
    %c0_70 = arith.constant 0 : index
    %106 = vector.load %arg24[%c0_69, %c0_70] : memref<32x128xbf16, #tpu.memory_space<vmem>>, vector<32x128xbf16>
    %cst_71 = arith.constant dense<0.000000e+00> : vector<8x128xf32>
    %107 = tpu.matmul %105, %106, %cst_71 {dimension_numbers = #tpu.dot_dimension_numbers<[1], [0], [0], [1], [0, 0, 1, 1], [], []>} : vector<8x32xbf16>, vector<32x128xbf16>, vector<8x128xf32> -> vector<8x128xf32>
    %108 = vector.broadcast %10 : vector<1x128xf32> to vector<8x128xf32>
    %109 = arith.addf %107, %108 : vector<8x128xf32>
    %cst_72 = arith.constant dense<0xFF800000> : vector<8xf32>
    %110 = vector.multi_reduction <maximumf>, %109, %cst_72 [1] : vector<8x128xf32> to vector<8xf32>
    %111 = vector.shape_cast %110 : vector<8xf32> to vector<8x1xf32>
    %112 = tpu.iota {dimensions = array<i32: 1>} : vector<8x128xi32>
    %113 = arith.sitofp %112 : vector<8x128xi32> to vector<8x128xf32>
    %114 = vector.broadcast %111 : vector<8x1xf32> to vector<8x128xf32>
    %115 = arith.cmpf oeq, %109, %114 : vector<8x128xf32>
    %cst_73 = arith.constant 1.280000e+02 : f32
    %116 = vector.broadcast %cst_73 : f32 to vector<8x128xf32>
    %117 = arith.select %115, %113, %116 : vector<8x128xi1>, vector<8x128xf32>
    %cst_74 = arith.constant dense<0x7F800000> : vector<8xf32>
    %118 = vector.multi_reduction <minimumf>, %117, %cst_74 [1] : vector<8x128xf32> to vector<8xf32>
    %119 = vector.shape_cast %118 : vector<8xf32> to vector<8x1xf32>
    %120 = vector.broadcast %111 : vector<8x1xf32> to vector<8x128xf32>
    %121 = arith.subf %109, %120 : vector<8x128xf32>
    %122 = math.exp %121 : vector<8x128xf32>
    %cst_75 = arith.constant dense<0.000000e+00> : vector<8xf32>
    %123 = vector.multi_reduction <add>, %122, %cst_75 [1] : vector<8x128xf32> to vector<8xf32>
    %124 = vector.shape_cast %123 : vector<8xf32> to vector<8x1xf32>
    %125 = math.log %124 : vector<8x1xf32>
    %cst_76 = arith.constant 0.000000e+00 : f32
    %126 = vector.broadcast %cst_76 : f32 to vector<8x1xf32>
    %127 = arith.subf %126, %125 : vector<8x1xf32>
    %128 = tpu.iota {dimensions = array<i32: 1>} : vector<8x128xi32>
    %c0_i32 = arith.constant 0 : i32
    %129 = vector.broadcast %c0_i32 : i32 to vector<8x128xi32>
    %130 = arith.cmpi eq, %128, %129 : vector<8x128xi32>
    %c1_i32 = arith.constant 1 : i32
    %131 = vector.broadcast %c1_i32 : i32 to vector<8x128xi32>
    %132 = arith.cmpi eq, %128, %131 : vector<8x128xi32>
    %cst_77 = arith.constant 0.000000e+00 : f32
    %133 = vector.shape_cast %127 : vector<8x1xf32> to vector<8x1xf32>
    %134 = vector.broadcast %133 : vector<8x1xf32> to vector<8x128xf32>
    %135 = vector.broadcast %cst_77 : f32 to vector<8x128xf32>
    %136 = arith.select %132, %134, %135 : vector<8x128xi1>, vector<8x128xf32>
    %137 = vector.shape_cast %119 : vector<8x1xf32> to vector<8x1xf32>
    %138 = vector.broadcast %137 : vector<8x1xf32> to vector<8x128xf32>
    %139 = arith.select %130, %138, %136 : vector<8x128xi1>, vector<8x128xf32>
    %c0_78 = arith.constant 0 : index
    %c0_79 = arith.constant 0 : index
    %140 = vector.load %arg26[%c0_78, %c0_79] : memref<8x128xf32, #tpu.memory_space<vmem>>, vector<8x128xf32>
    tpu.vector_store %arg26[%c0_78, %c0_79], %139 {strides = array<i32>} : memref<8x128xf32, #tpu.memory_space<vmem>>, vector<8x128xf32>,
    return
  }
  func.func @transform_0(%arg0: i32) -> (i32, i32) {
    %c0_i32 = arith.constant 0 : i32
    %c0_i32_0 = arith.constant 0 : i32
    return %arg0, %c0_i32 : i32, i32
  }
  func.func @transform_1(%arg0: i32) -> (i32, i32) {
    %c0_i32 = arith.constant 0 : i32
    %c0_i32_0 = arith.constant 0 : i32
    return %arg0, %c0_i32 : i32, i32
  }
  func.func @transform_2(%arg0: i32) -> (i32, i32) {
    %c0_i32 = arith.constant 0 : i32
    %c0_i32_0 = arith.constant 0 : i32
    return %arg0, %c0_i32 : i32, i32
  }
  func.func @transform_3(%arg0: i32) -> (i32, i32) {
    %c0_i32 = arith.constant 0 : i32
    %c0_i32_0 = arith.constant 0 : i32
    %c0_i32_1 = arith.constant 0 : i32
    return %c0_i32, %c0_i32_0 : i32, i32
  }
  func.func @transform_4(%arg0: i32) -> (i32, i32) {
    %c0_i32 = arith.constant 0 : i32
    %c0_i32_0 = arith.constant 0 : i32
    %c0_i32_1 = arith.constant 0 : i32
    return %c0_i32, %c0_i32_0 : i32, i32
  }
  func.func @transform_5(%arg0: i32) -> (i32, i32) {
    %c0_i32 = arith.constant 0 : i32
    %c0_i32_0 = arith.constant 0 : i32
    %c0_i32_1 = arith.constant 0 : i32
    return %c0_i32, %c0_i32_0 : i32, i32
  }
  func.func @transform_6(%arg0: i32) -> (i32, i32) {
    %c0_i32 = arith.constant 0 : i32
    %c0_i32_0 = arith.constant 0 : i32
    %c0_i32_1 = arith.constant 0 : i32
    return %c0_i32, %c0_i32_0 : i32, i32
  }
  func.func @transform_7(%arg0: i32) -> (i32, i32) {
    %c0_i32 = arith.constant 0 : i32
    %c0_i32_0 = arith.constant 0 : i32
    %c0_i32_1 = arith.constant 0 : i32
    return %c0_i32, %c0_i32_0 : i32, i32
  }
  func.func @transform_8(%arg0: i32) -> (i32, i32) {
    %c0_i32 = arith.constant 0 : i32
    %c0_i32_0 = arith.constant 0 : i32
    %c0_i32_1 = arith.constant 0 : i32
    return %c0_i32, %c0_i32_0 : i32, i32
  }
  func.func @transform_9(%arg0: i32) -> (i32, i32) {
    %c0_i32 = arith.constant 0 : i32
    %c0_i32_0 = arith.constant 0 : i32
    %c0_i32_1 = arith.constant 0 : i32
    return %c0_i32, %c0_i32_0 : i32, i32
  }
  func.func @transform_10(%arg0: i32) -> (i32, i32) {
    %c0_i32 = arith.constant 0 : i32
    %c0_i32_0 = arith.constant 0 : i32
    %c0_i32_1 = arith.constant 0 : i32
    return %c0_i32, %c0_i32_0 : i32, i32
  }
  func.func @transform_11(%arg0: i32) -> (i32, i32) {
    %c0_i32 = arith.constant 0 : i32
    %c0_i32_0 = arith.constant 0 : i32
    %c0_i32_1 = arith.constant 0 : i32
    return %c0_i32, %c0_i32_0 : i32, i32
  }
  func.func @transform_12(%arg0: i32) -> (i32, i32) {
    %c0_i32 = arith.constant 0 : i32
    %c0_i32_0 = arith.constant 0 : i32
    %c0_i32_1 = arith.constant 0 : i32
    return %c0_i32, %c0_i32_0 : i32, i32
  }
  func.func @transform_13(%arg0: i32) -> (i32, i32) {
    %c0_i32 = arith.constant 0 : i32
    %c0_i32_0 = arith.constant 0 : i32
    %c0_i32_1 = arith.constant 0 : i32
    return %c0_i32, %c0_i32_0 : i32, i32
  }
  func.func @transform_14(%arg0: i32) -> (i32, i32) {
    %c0_i32 = arith.constant 0 : i32
    %c0_i32_0 = arith.constant 0 : i32
    %c0_i32_1 = arith.constant 0 : i32
    return %c0_i32, %c0_i32_0 : i32, i32
  }
  func.func @transform_15(%arg0: i32) -> (i32, i32) {
    %c0_i32 = arith.constant 0 : i32
    %c0_i32_0 = arith.constant 0 : i32
    %c0_i32_1 = arith.constant 0 : i32
    return %c0_i32, %c0_i32_0 : i32, i32
  }
  func.func @transform_16(%arg0: i32) -> (i32, i32) {
    %c0_i32 = arith.constant 0 : i32
    %c0_i32_0 = arith.constant 0 : i32
    %c0_i32_1 = arith.constant 0 : i32
    return %c0_i32, %c0_i32_0 : i32, i32
  }
  func.func @transform_17(%arg0: i32) -> (i32, i32) {
    %c0_i32 = arith.constant 0 : i32
    %c0_i32_0 = arith.constant 0 : i32
    %c0_i32_1 = arith.constant 0 : i32
    return %c0_i32, %c0_i32_0 : i32, i32
  }
  func.func @transform_18(%arg0: i32) -> (i32, i32) {
    %c0_i32 = arith.constant 0 : i32
    %c0_i32_0 = arith.constant 0 : i32
    %c0_i32_1 = arith.constant 0 : i32
    return %c0_i32, %c0_i32_0 : i32, i32
  }
  func.func @transform_19(%arg0: i32) -> (i32, i32) {
    %c0_i32 = arith.constant 0 : i32
    %c0_i32_0 = arith.constant 0 : i32
    %c0_i32_1 = arith.constant 0 : i32
    return %c0_i32, %c0_i32_0 : i32, i32
  }
  func.func @transform_20(%arg0: i32) -> (i32, i32) {
    %c0_i32 = arith.constant 0 : i32
    %c0_i32_0 = arith.constant 0 : i32
    %c0_i32_1 = arith.constant 0 : i32
    return %c0_i32, %c0_i32_0 : i32, i32
  }
  func.func @transform_21(%arg0: i32) -> (i32, i32) {
    %c0_i32 = arith.constant 0 : i32
    %c0_i32_0 = arith.constant 0 : i32
    %c0_i32_1 = arith.constant 0 : i32
    return %c0_i32, %c0_i32_0 : i32, i32
  }
  func.func @transform_22(%arg0: i32) -> (i32, i32) {
    %c0_i32 = arith.constant 0 : i32
    %c0_i32_0 = arith.constant 0 : i32
    %c0_i32_1 = arith.constant 0 : i32
    return %c0_i32, %c0_i32_0 : i32, i32
  }
  func.func @transform_23(%arg0: i32) -> (i32, i32) {
    %c0_i32 = arith.constant 0 : i32
    %c0_i32_0 = arith.constant 0 : i32
    %c0_i32_1 = arith.constant 0 : i32
    return %c0_i32, %c0_i32_0 : i32, i32
  }
  func.func @transform_24(%arg0: i32) -> (i32, i32) {
    %c0_i32 = arith.constant 0 : i32
    %c0_i32_0 = arith.constant 0 : i32
    %c0_i32_1 = arith.constant 0 : i32
    return %c0_i32, %c0_i32_0 : i32, i32
  }
  func.func @transform_25(%arg0: i32) -> (i32, i32) {
    %c0_i32 = arith.constant 0 : i32
    %c0_i32_0 = arith.constant 0 : i32
    return %arg0, %c0_i32 : i32, i32
  }
  func.func @transform_26(%arg0: i32) -> (i32, i32) {
    %c0_i32 = arith.constant 0 : i32
    %c0_i32_0 = arith.constant 0 : i32
    return %arg0, %c0_i32 : i32, i32
  }
}

</mosaic_0001>

<llo_original>
// kernel: tpu_custom_call.1
$region0: #{tpu_custom_call.1}
  #allocation0 [shape = 'u32[]', space=smem, size = 0x4, offset = 0x4, fixed_abs, tag = 'smem constant byte address 0x4 - core index']
  #allocation1 [shape = 'u32[72,128]{1,0:T(1,128)}', space=vmem, size = 0x9000, scoped, tag = 'internal scratch']
  %s0 = inlined_call_operand.vmem [shape: f32[8,128], index: 0, kind: input, shape index: {}]
  %s1 = inlined_call_operand.vmem [shape: f32[8,32], index: 1, kind: input, shape index: {}]
  %s2 = inlined_call_operand.vmem [shape: f32[8,1], index: 2, kind: input, shape index: {}]
  %s3 = inlined_call_operand.vmem [shape: f32[8,8], index: 3, kind: input, shape index: {}]
  %s4 = inlined_call_operand.vmem [shape: bf16[128,32], index: 4, kind: input, shape index: {}]
  %s5 = inlined_call_operand.vmem [shape: f32[1,32], index: 5, kind: input, shape index: {}]
  %s6 = inlined_call_operand.vmem [shape: bf16[32,128], index: 6, kind: input, shape index: {}]
  %s7 = inlined_call_operand.vmem [shape: f32[1,128], index: 7, kind: input, shape index: {}]
  %s8 = inlined_call_operand.vmem [shape: bf16[128,32], index: 8, kind: input, shape index: {}]
  %s9 = inlined_call_operand.vmem [shape: bf16[128,32], index: 9, kind: input, shape index: {}]
  %s10 = inlined_call_operand.vmem [shape: bf16[128,32], index: 10, kind: input, shape index: {}]
  %s11 = inlined_call_operand.vmem [shape: bf16[32,32], index: 11, kind: input, shape index: {}]
  %s12 = inlined_call_operand.vmem [shape: bf16[32,32], index: 12, kind: input, shape index: {}]
  %s13 = inlined_call_operand.vmem [shape: bf16[32,32], index: 13, kind: input, shape index: {}]
  %s14 = inlined_call_operand.vmem [shape: bf16[32,32], index: 14, kind: input, shape index: {}]
  %s15 = inlined_call_operand.vmem [shape: bf16[32,32], index: 15, kind: input, shape index: {}]
  %s16 = inlined_call_operand.vmem [shape: bf16[32,32], index: 16, kind: input, shape index: {}]
  %s17 = inlined_call_operand.vmem [shape: f32[1,32], index: 17, kind: input, shape index: {}]
  %s18 = inlined_call_operand.vmem [shape: f32[1,32], index: 18, kind: input, shape index: {}]
  %s19 = inlined_call_operand.vmem [shape: f32[1,32], index: 19, kind: input, shape index: {}]
  %s20 = inlined_call_operand.vmem [shape: f32[1,32], index: 20, kind: input, shape index: {}]
  %s21 = inlined_call_operand.vmem [shape: f32[1,32], index: 21, kind: input, shape index: {}]
  %s22 = inlined_call_operand.vmem [shape: f32[1,32], index: 22, kind: input, shape index: {}]
  %s23 = inlined_call_operand.vmem [shape: bf16[32,128], index: 23, kind: input, shape index: {}]
  %s24 = inlined_call_operand.vmem [shape: f32[1,128], index: 24, kind: input, shape index: {}]
  %s25 = inlined_call_operand.hbm [shape: f32[8,128], index: 25, kind: output, shape index: {0}]
  %s26 = inlined_call_operand.hbm [shape: f32[8,32], index: 26, kind: output, shape index: {1}]
  %27 = xla_tuple %s25, %s26
  %s28 = sld [smem:[#allocation0]]
  $region118: #{tpu_custom_call.1} parent=0
    _
  %s30 = ssub.s32 1, %s28
  %s31 = scalar_select 0, %s30, %s28
  $region1: #{tpu_custom_call.1} parent=0
    #allocation2 [shape = 'u8[4096]{0}', space=vmem, size = 0x1000, scoped, tag = 'output window, operand 0, single buffered']
    #allocation3 [shape = 's32[1]{0}', space=sflag, size = 0x4, scoped, tag = 'scoped memory for tpu_custom_call.1']
    #allocation4 [shape = 'u8[4096]{0}', space=vmem, size = 0x1000, scoped, tag = 'output window, operand 1, single buffered']
    #allocation5 [shape = 's32[1]{0}', space=sflag, size = 0x4, scoped, tag = 'scoped memory for tpu_custom_call.1']
    %32 = vsyncpa [#allocation3], 0
    %33 = vsyncpa [#allocation5], 0
    // Predicated region
    $region2: #{tpu_custom_call.1} parent=1 // pred_check
      _
    $region3: #{tpu_custom_call.1} parent=1 // pred_check_branch
      %35 = sbr.rel (0) target = $region5
    $region4: #{tpu_custom_call.1} parent=1 // pred_region
      _
    $region5: #{tpu_custom_call.1} parent=1 // pred_fallthru
      _
    // Predicated region
    $region6: #{tpu_custom_call.1} parent=1 // pred_check
      _
    $region7: #{tpu_custom_call.1} parent=1 // pred_check_branch
      %37 = sbr.rel (0) target = $region9
    $region8: #{tpu_custom_call.1} parent=1 // pred_region
      _
    $region9: #{tpu_custom_call.1} parent=1 // pred_fallthru
      _
    // Predicated region
    $region10: #{tpu_custom_call.1} parent=1 // pred_check
      _
    $region11: #{tpu_custom_call.1} parent=1 // pred_check_branch
      %39 = sbr.rel (0) target = $region13
    $region12: #{tpu_custom_call.1} parent=1 // pred_region
      _
    $region13: #{tpu_custom_call.1} parent=1 // pred_fallthru
      _
    // Predicated region
    $region14: #{tpu_custom_call.1} parent=1 // pred_check
      _
    $region15: #{tpu_custom_call.1} parent=1 // pred_check_branch
      %41 = sbr.rel (0) target = $region17
    $region16: #{tpu_custom_call.1} parent=1 // pred_region
      _
    $region17: #{tpu_custom_call.1} parent=1 // pred_fallthru
      _
    // Predicated region
    $region18: #{tpu_custom_call.1} parent=1 // pred_check
      _
    $region19: #{tpu_custom_call.1} parent=1 // pred_check_branch
      %43 = sbr.rel (0) target = $region21
    $region20: #{tpu_custom_call.1} parent=1 // pred_region
      _
    $region21: #{tpu_custom_call.1} parent=1 // pred_fallthru
      _
    // Predicated region
    $region22: #{tpu_custom_call.1} parent=1 // pred_check
      _
    $region23: #{tpu_custom_call.1} parent=1 // pred_check_branch
      %45 = sbr.rel (0) target = $region25
    $region24: #{tpu_custom_call.1} parent=1 // pred_region
      _
    $region25: #{tpu_custom_call.1} parent=1 // pred_fallthru
      _
    // Predicated region
    $region26: #{tpu_custom_call.1} parent=1 // pred_check
      _
    $region27: #{tpu_custom_call.1} parent=1 // pred_check_branch
      %47 = sbr.rel (0) target = $region29
    $region28: #{tpu_custom_call.1} parent=1 // pred_region
      _
    $region29: #{tpu_custom_call.1} parent=1 // pred_fallthru
      _
    // Predicated region
    $region30: #{tpu_custom_call.1} parent=1 // pred_check
      _
    $region31: #{tpu_custom_call.1} parent=1 // pred_check_branch
      %49 = sbr.rel (0) target = $region33
    $region32: #{tpu_custom_call.1} parent=1 // pred_region
      _
    $region33: #{tpu_custom_call.1} parent=1 // pred_fallthru
      _
    // Predicated region
    $region34: #{tpu_custom_call.1} parent=1 // pred_check
      _
    $region35: #{tpu_custom_call.1} parent=1 // pred_check_branch
      %51 = sbr.rel (0) target = $region37
    $region36: #{tpu_custom_call.1} parent=1 // pred_region
      _
    $region37: #{tpu_custom_call.1} parent=1 // pred_fallthru
      _
    // Predicated region
    $region38: #{tpu_custom_call.1} parent=1 // pred_check
      _
    $region39: #{tpu_custom_call.1} parent=1 // pred_check_branch
      %53 = sbr.rel (0) target = $region41
    $region40: #{tpu_custom_call.1} parent=1 // pred_region
      _
    $region41: #{tpu_custom_call.1} parent=1 // pred_fallthru
      _
    // Predicated region
    $region42: #{tpu_custom_call.1} parent=1 // pred_check
      _
    $region43: #{tpu_custom_call.1} parent=1 // pred_check_branch
      %55 = sbr.rel (0) target = $region45
    $region44: #{tpu_custom_call.1} parent=1 // pred_region
      _
    $region45: #{tpu_custom_call.1} parent=1 // pred_fallthru
      _
    // Predicated region
    $region46: #{tpu_custom_call.1} parent=1 // pred_check
      _
    $region47: #{tpu_custom_call.1} parent=1 // pred_check_branch
      %57 = sbr.rel (0) target = $region49
    $region48: #{tpu_custom_call.1} parent=1 // pred_region
      _
    $region49: #{tpu_custom_call.1} parent=1 // pred_fallthru
      _
    // Predicated region
    $region50: #{tpu_custom_call.1} parent=1 // pred_check
      _
    $region51: #{tpu_custom_call.1} parent=1 // pred_check_branch
      %59 = sbr.rel (0) target = $region53
    $region52: #{tpu_custom_call.1} parent=1 // pred_region
      _
    $region53: #{tpu_custom_call.1} parent=1 // pred_fallthru
      _
    // Predicated region
    $region54: #{tpu_custom_call.1} parent=1 // pred_check
      _
    $region55: #{tpu_custom_call.1} parent=1 // pred_check_branch
      %61 = sbr.rel (0) target = $region57
    $region56: #{tpu_custom_call.1} parent=1 // pred_region
      _
    $region57: #{tpu_custom_call.1} parent=1 // pred_fallthru
      _
    // Predicated region
    $region58: #{tpu_custom_call.1} parent=1 // pred_check
      _
    $region59: #{tpu_custom_call.1} parent=1 // pred_check_branch
      %63 = sbr.rel (0) target = $region61
    $region60: #{tpu_custom_call.1} parent=1 // pred_region
      _
    $region61: #{tpu_custom_call.1} parent=1 // pred_fallthru
      _
    // Predicated region
    $region62: #{tpu_custom_call.1} parent=1 // pred_check
      _
    $region63: #{tpu_custom_call.1} parent=1 // pred_check_branch
      %65 = sbr.rel (0) target = $region65
    $region64: #{tpu_custom_call.1} parent=1 // pred_region
      _
    $region65: #{tpu_custom_call.1} parent=1 // pred_fallthru
      _
    // Predicated region
    $region66: #{tpu_custom_call.1} parent=1 // pred_check
      _
    $region67: #{tpu_custom_call.1} parent=1 // pred_check_branch
      %67 = sbr.rel (0) target = $region69
    $region68: #{tpu_custom_call.1} parent=1 // pred_region
      _
    $region69: #{tpu_custom_call.1} parent=1 // pred_fallthru
      _
    // Predicated region
    $region70: #{tpu_custom_call.1} parent=1 // pred_check
      _
    $region71: #{tpu_custom_call.1} parent=1 // pred_check_branch
      %69 = sbr.rel (0) target = $region73
    $region72: #{tpu_custom_call.1} parent=1 // pred_region
      _
    $region73: #{tpu_custom_call.1} parent=1 // pred_fallthru
      _
    // Predicated region
    $region74: #{tpu_custom_call.1} parent=1 // pred_check
      _
    $region75: #{tpu_custom_call.1} parent=1 // pred_check_branch
      %71 = sbr.rel (0) target = $region77
    $region76: #{tpu_custom_call.1} parent=1 // pred_region
      _
    $region77: #{tpu_custom_call.1} parent=1 // pred_fallthru
      _
    // Predicated region
    $region78: #{tpu_custom_call.1} parent=1 // pred_check
      _
    $region79: #{tpu_custom_call.1} parent=1 // pred_check_branch
      %73 = sbr.rel (0) target = $region81
    $region80: #{tpu_custom_call.1} parent=1 // pred_region
      _
    $region81: #{tpu_custom_call.1} parent=1 // pred_fallthru
      _
    // Predicated region
    $region82: #{tpu_custom_call.1} parent=1 // pred_check
      _
    $region83: #{tpu_custom_call.1} parent=1 // pred_check_branch
      %75 = sbr.rel (0) target = $region85
    $region84: #{tpu_custom_call.1} parent=1 // pred_region
      _
    $region85: #{tpu_custom_call.1} parent=1 // pred_fallthru
      _
    // Predicated region
    $region86: #{tpu_custom_call.1} parent=1 // pred_check
      _
    $region87: #{tpu_custom_call.1} parent=1 // pred_check_branch
      %77 = sbr.rel (0) target = $region89
    $region88: #{tpu_custom_call.1} parent=1 // pred_region
      _
    $region89: #{tpu_custom_call.1} parent=1 // pred_fallthru
      _
    // Predicated region
    $region90: #{tpu_custom_call.1} parent=1 // pred_check
      _
    $region91: #{tpu_custom_call.1} parent=1 // pred_check_branch
      %79 = sbr.rel (0) target = $region93
    $region92: #{tpu_custom_call.1} parent=1 // pred_region
      _
    $region93: #{tpu_custom_call.1} parent=1 // pred_fallthru
      _
    // Predicated region
    $region94: #{tpu_custom_call.1} parent=1 // pred_check
      _
    $region95: #{tpu_custom_call.1} parent=1 // pred_check_branch
      %81 = sbr.rel (0) target = $region97
    $region96: #{tpu_custom_call.1} parent=1 // pred_region
      _
    $region97: #{tpu_custom_call.1} parent=1 // pred_fallthru
      _
    // Predicated region
    $region98: #{tpu_custom_call.1} parent=1 // pred_check
      _
    $region99: #{tpu_custom_call.1} parent=1 // pred_check_branch
      %83 = sbr.rel (0) target = $region101
    $region100: #{tpu_custom_call.1} parent=1 // pred_region
      _
    $region101: #{tpu_custom_call.1} parent=1 // pred_fallthru
      _
    %v85 = vld [vmem:[%s0] sm:$0xff]
    %v86 = vld [vmem:[%s2] sm:$0xff]
    %v87 = vld [vmem:[%s5] sm:$0x1]
    %v88 = vld [vmem:[%s7] sm:$0x1]
    %v89 = vld [vmem:[%s17] sm:$0x1]
    %v90 = vld [vmem:[%s18] sm:$0x1]
    %v91 = vld [vmem:[%s19] sm:$0x1]
    %v92 = vld [vmem:[%s20] sm:$0x1]
    %v93 = vld [vmem:[%s21] sm:$0x1]
    %v94 = vld [vmem:[%s22] sm:$0x1]
    %v95 = vld [vmem:[%s24] sm:$0x1]
    %v96 = vpack.c.bf16 %v85, %v85
    %v97 = vld [vmem:[%s4] sm:$0xf]
    %v98 = vld [vmem:[%s4 + $0x4] sm:$0xf]
    %v99 = vld [vmem:[%s4 + $0x8] sm:$0xf]
    %v100 = vld [vmem:[%s4 + $0xc] sm:$0xf]
    %v101 = vld [vmem:[%s4 + $0x10] sm:$0xf]
    %v102 = vld [vmem:[%s4 + $0x14] sm:$0xf]
    %v103 = vld [vmem:[%s4 + $0x18] sm:$0xf]
    %v104 = vld [vmem:[%s4 + $0x1c] sm:$0xf]
    %v105 = vld [vmem:[%s4 + $0x20] sm:$0xf]
    %v106 = vld [vmem:[%s4 + $0x24] sm:$0xf]
    %v107 = vld [vmem:[%s4 + $0x28] sm:$0xf]
    %v108 = vld [vmem:[%s4 + $0x2c] sm:$0xf]
    %v109 = vld [vmem:[%s4 + $0x30] sm:$0xf]
    %v110 = vld [vmem:[%s4 + $0x34] sm:$0xf]
    %v111 = vld [vmem:[%s4 + $0x38] sm:$0xf]
    %v112 = vld [vmem:[%s4 + $0x3c] sm:$0xf]
    %v114 = vperm.slane %v87, 0
    %v132 = vunpack.c.l.b16 %v97
    %v133 = vunpack.c.l.b16 %v98
    %v134 = vunpack.c.l.b16 %v99
    %v135 = vunpack.c.l.b16 %v100
    %v136 = vunpack.c.l.b16 %v101
    %v137 = vunpack.c.l.b16 %v102
    %v138 = vunpack.c.l.b16 %v103
    %v139 = vunpack.c.l.b16 %v104
    %v140 = vunpack.c.l.b16 %v105
    %v141 = vunpack.c.l.b16 %v106
    %v142 = vunpack.c.l.b16 %v107
    %v143 = vunpack.c.l.b16 %v108
    %v144 = vunpack.c.l.b16 %v109
    %v145 = vunpack.c.l.b16 %v110
    %v146 = vunpack.c.l.b16 %v111
    %v147 = vunpack.c.l.b16 %v112
    %v148 = vpack.c.b16 %v133, %v132
    %v149 = vpack.c.b16 %v135, %v134
    %v150 = vpack.c.b16 %v137, %v136
    %v151 = vpack.c.b16 %v139, %v138
    %v152 = vpack.c.b16 %v141, %v140
    %v153 = vpack.c.b16 %v143, %v142
    %v154 = vpack.c.b16 %v145, %v144
    %v155 = vpack.c.b16 %v147, %v146
    %164 = vmatpush.bf16.msra.mxu0 %v155
    %165 = vmatpush.bf16.msra.mxu0 %v154
    %166 = vmatpush.bf16.msra.mxu0 %v153
    %167 = vmatpush.bf16.msra.mxu0 %v152
    %168 = vmatpush.bf16.msra.mxu0 %v151
    %169 = vmatpush.bf16.msra.mxu0 %v150
    %170 = vmatpush.bf16.msra.mxu0 %v149
    %171 = vmatpush.bf16.msra.mxu0 %v148
    %172 = vmatmul.bf16.gmra.mxu0 %v96
    %v173 = vpop.f32.mrf.mxu0
    %v174 = vadd.f32 %v114, %v173
    %v175 = vpop.f32.mrf.mxu0
    %176 = vdwg.mxu0
    %v177 = vpack.c.bf16 %v174, %v174
    %v178 = vld [vmem:[%s6] sm:$0xf]
    %v179 = vld [vmem:[%s6 + $0x4] sm:$0xf]
    %v180 = vld [vmem:[%s6 + $0x8] sm:$0xf]
    %v181 = vld [vmem:[%s6 + $0xc] sm:$0xf]
    %v183 = vperm.slane %v88, 0
    %v189 = vunpack.c.l.b16 %v178
    %v190 = vunpack.c.l.b16 %v179
    %v191 = vunpack.c.l.b16 %v180
    %v192 = vunpack.c.l.b16 %v181
    %v193 = vpack.c.b16 %v190, %v189
    %v194 = vpack.c.b16 %v192, %v191
    %vm197 = vcmask 261120
    %v199 = vsel %vm197, %v177, 0
    %201 = vmatpush.bf16.msra.mxu0 0
    %202 = vmatpush.bf16.msra.mxu0 0
    %203 = vmatpush.bf16.msra.mxu0 0
    %204 = vmatpush.bf16.msra.mxu0 0
    %205 = vmatpush.bf16.msra.mxu0 0
    %206 = vmatpush.bf16.msra.mxu0 0
    %207 = vmatpush.bf16.msra.mxu0 %v194
    %208 = vmatpush.bf16.msra.mxu0 %v193
    %209 = vmatmul.bf16.gmra.mxu0 %v199
    %v210 = vpop.f32.mrf.mxu0
    %v211 = vadd.f32 %v183, %v210
    %v212 = vpop.f32.mrf.mxu0
    %213 = vdwg.mxu0
    %v214 = vtanh.pop %v211
    %v215 = vld [vmem:[%s3] sm:$0xff]
    %vm216 = vcmask 64512
    %v218 = vsel %vm216, %v215, 0
    %220 = vmatpush.msra.mxu0 0.0
    %221 = vmatpush.msra.mxu0 0.0
    %222 = vmatpush.msra.mxu0 0.0
    %223 = vmatpush.msra.mxu0 0.0
    %224 = vmatpush.msra.mxu0 0.0
    %225 = vmatpush.msra.mxu0 0.0
    %226 = vmatpush.msra.mxu0 0.0
    %227 = vmatpush.msra.mxu0 0.0
    %228 = vmatpush.msra.mxu0 0.0
    %229 = vmatpush.msra.mxu0 0.0
    %230 = vmatpush.msra.mxu0 0.0
    %231 = vmatpush.msra.mxu0 0.0
    %232 = vmatpush.msra.mxu0 0.0
    %233 = vmatpush.msra.mxu0 0.0
    %234 = vmatpush.msra.mxu0 0.0
    %235 = vmatpush.msra.mxu0 %v214
    %236 = vmatmul.f32.gmra.mxu0 %v218
    %v237 = vpop.f32.mrf.mxu0
    %v238 = vadd.f32 0.0, %v237
    %239 = vdwg.mxu0
    %v240 = vmul.f32 %v238, 0.33333334
    %v241 = vpack.c.bf16 %v240, %v240
    %v242 = vld [vmem:[%s1] sm:$0xff]
    %244 = vset.pattern.permute.xlu0 0
    %245 = vperm.xlu0 %244, %v86
    %v246 = vpop.permute.xlu0 %245
    %v248 = vmul.f32 %v242, %v246
    %v249 = vpack.c.bf16 %v248, %v248
    %v250 = vld [vmem:[%s8] sm:$0xf]
    %v251 = vld [vmem:[%s8 + $0x4] sm:$0xf]
    %v252 = vld [vmem:[%s8 + $0x8] sm:$0xf]
    %v253 = vld [vmem:[%s8 + $0xc] sm:$0xf]
    %v254 = vld [vmem:[%s8 + $0x10] sm:$0xf]
    %v255 = vld [vmem:[%s8 + $0x14] sm:$0xf]
    %v256 = vld [vmem:[%s8 + $0x18] sm:$0xf]
    %v257 = vld [vmem:[%s8 + $0x1c] sm:$0xf]
    %v258 = vld [vmem:[%s8 + $0x20] sm:$0xf]
    %v259 = vld [vmem:[%s8 + $0x24] sm:$0xf]
    %v260 = vld [vmem:[%s8 + $0x28] sm:$0xf]
    %v261 = vld [vmem:[%s8 + $0x2c] sm:$0xf]
    %v262 = vld [vmem:[%s8 + $0x30] sm:$0xf]
    %v263 = vld [vmem:[%s8 + $0x34] sm:$0xf]
    %v264 = vld [vmem:[%s8 + $0x38] sm:$0xf]
    %v265 = vld [vmem:[%s8 + $0x3c] sm:$0xf]
    %v266 = vld [vmem:[%s11] sm:$0xf]
    %v267 = vld [vmem:[%s11 + $0x4] sm:$0xf]
    %v268 = vld [vmem:[%s11 + $0x8] sm:$0xf]
    %v269 = vld [vmem:[%s11 + $0xc] sm:$0xf]
    %v274 = vunpack.c.l.b16 %v266
    %v275 = vunpack.c.l.b16 %v267
    %v276 = vunpack.c.l.b16 %v268
    %v277 = vunpack.c.l.b16 %v269
    %v278 = vpack.c.b16 %v275, %v274
    %v279 = vpack.c.b16 %v277, %v276
    %282 = vmatpush.bf16.msra.mxu0 0
    %283 = vmatpush.bf16.msra.mxu0 0
    %284 = vmatpush.bf16.msra.mxu0 0
    %285 = vmatpush.bf16.msra.mxu0 0
    %286 = vmatpush.bf16.msra.mxu0 0
    %287 = vmatpush.bf16.msra.mxu0 0
    %288 = vmatpush.bf16.msra.mxu0 %v279
    %289 = vmatpush.bf16.msra.mxu0 %v278
    %290 = vmatmul.bf16.gmra.mxu0 %v199
    %v291 = vpop.f32.mrf.mxu0
    %v292 = vadd.f32 0.0, %v291
    %v293 = vpop.f32.mrf.mxu0
    %294 = vdwg.mxu0
    %v311 = vunpack.c.l.b16 %v250
    %v312 = vunpack.c.l.b16 %v251
    %v313 = vunpack.c.l.b16 %v252
    %v314 = vunpack.c.l.b16 %v253
    %v315 = vunpack.c.l.b16 %v254
    %v316 = vunpack.c.l.b16 %v255
    %v317 = vunpack.c.l.b16 %v256
    %v318 = vunpack.c.l.b16 %v257
    %v319 = vunpack.c.l.b16 %v258
    %v320 = vunpack.c.l.b16 %v259
    %v321 = vunpack.c.l.b16 %v260
    %v322 = vunpack.c.l.b16 %v261
    %v323 = vunpack.c.l.b16 %v262
    %v324 = vunpack.c.l.b16 %v263
    %v325 = vunpack.c.l.b16 %v264
    %v326 = vunpack.c.l.b16 %v265
    %v327 = vpack.c.b16 %v312, %v311
    %v328 = vpack.c.b16 %v314, %v313
    %v329 = vpack.c.b16 %v316, %v315
    %v330 = vpack.c.b16 %v318, %v317
    %v331 = vpack.c.b16 %v320, %v319
    %v332 = vpack.c.b16 %v322, %v321
    %v333 = vpack.c.b16 %v324, %v323
    %v334 = vpack.c.b16 %v326, %v325
    %343 = vmatpush.bf16.msra.mxu0 %v334
    %344 = vmatpush.bf16.msra.mxu0 %v333
    %345 = vmatpush.bf16.msra.mxu0 %v332
    %346 = vmatpush.bf16.msra.mxu0 %v331
    %347 = vmatpush.bf16.msra.mxu0 %v330
    %348 = vmatpush.bf16.msra.mxu0 %v329
    %349 = vmatpush.bf16.msra.mxu0 %v328
    %350 = vmatpush.bf16.msra.mxu0 %v327
    %351 = vmatmul.bf16.gmra.mxu0 %v241
    %v352 = vpop.f32.mrf.mxu0
    %v353 = vadd.f32 %v292, %v352
    %v354 = vpop.f32.mrf.mxu0
    %355 = vdwg.mxu0
    %v356 = vld [vmem:[%s14] sm:$0xf]
    %v357 = vld [vmem:[%s14 + $0x4] sm:$0xf]
    %v358 = vld [vmem:[%s14 + $0x8] sm:$0xf]
    %v359 = vld [vmem:[%s14 + $0xc] sm:$0xf]
    %v364 = vunpack.c.l.b16 %v356
    %v365 = vunpack.c.l.b16 %v357
    %v366 = vunpack.c.l.b16 %v358
    %v367 = vunpack.c.l.b16 %v359
    %v368 = vpack.c.b16 %v365, %v364
    %v369 = vpack.c.b16 %v367, %v366
    %v373 = vsel %vm197, %v249, 0
    %375 = vmatpush.bf16.msra.mxu0 0
    %376 = vmatpush.bf16.msra.mxu0 0
    %377 = vmatpush.bf16.msra.mxu0 0
    %378 = vmatpush.bf16.msra.mxu0 0
    %379 = vmatpush.bf16.msra.mxu0 0
    %380 = vmatpush.bf16.msra.mxu0 0
    %381 = vmatpush.bf16.msra.mxu0 %v369
    %382 = vmatpush.bf16.msra.mxu0 %v368
    %383 = vmatmul.bf16.gmra.mxu0 %v373
    %v384 = vpop.f32.mrf.mxu0
    %v385 = vadd.f32 0.0, %v384
    %v386 = vpop.f32.mrf.mxu0
    %387 = vdwg.mxu0
    %v388 = vadd.f32 %v353, %v385
    %v390 = vperm.slane %v89, 0
    %v392 = vadd.f32 %v388, %v390
    %v393 = vxor.u32 %v392, 2147483648
    %v394 = vmul.f32 %v393, 1.442695
    %v395 = vpow.pop %v394
    %v396 = vadd.f32 %v395, 1.0
    %v397 = vrcp.pop %v396
    %v398 = vmul.f32 %v396, %v397
    %v399 = vsub.f32 1.0, %v398
    %v400 = vmul.f32 %v397, %v399
    %v401 = vadd.f32 %v397, %v400
    %vm402 = vweird.f32 %v396
    %vm403 = vweird.f32 %v397
    %vm404 = vmor %vm402, %vm403
    %v405 = vsel %vm404, %v397, %v401
    %v406 = vand.u32 2147483647, %v396
    %vm407 = vcmp.eq.f32.partialorder %v406, 8.507059e+37
    %v408 = vand.u32 %v396, 2147483648
    %v409 = vor.u32 1.1754944e-38, %v408
    %v410 = vsel %vm407, %v409, %v405
    %v411 = vmul.f32 1.0, %v410
    %v412 = vld [vmem:[%s9] sm:$0xf]
    %v413 = vld [vmem:[%s9 + $0x4] sm:$0xf]
    %v414 = vld [vmem:[%s9 + $0x8] sm:$0xf]
    %v415 = vld [vmem:[%s9 + $0xc] sm:$0xf]
    %v416 = vld [vmem:[%s9 + $0x10] sm:$0xf]
    %v417 = vld [vmem:[%s9 + $0x14] sm:$0xf]
    %v418 = vld [vmem:[%s9 + $0x18] sm:$0xf]
    %v419 = vld [vmem:[%s9 + $0x1c] sm:$0xf]
    %v420 = vld [vmem:[%s9 + $0x20] sm:$0xf]
    %v421 = vld [vmem:[%s9 + $0x24] sm:$0xf]
    %v422 = vld [vmem:[%s9 + $0x28] sm:$0xf]
    %v423 = vld [vmem:[%s9 + $0x2c] sm:$0xf]
    %v424 = vld [vmem:[%s9 + $0x30] sm:$0xf]
    %v425 = vld [vmem:[%s9 + $0x34] sm:$0xf]
    %v426 = vld [vmem:[%s9 + $0x38] sm:$0xf]
    %v427 = vld [vmem:[%s9 + $0x3c] sm:$0xf]
    %v428 = vld [vmem:[%s12] sm:$0xf]
    %v429 = vld [vmem:[%s12 + $0x4] sm:$0xf]
    %v430 = vld [vmem:[%s12 + $0x8] sm:$0xf]
    %v431 = vld [vmem:[%s12 + $0xc] sm:$0xf]
    %v436 = vunpack.c.l.b16 %v428
    %v437 = vunpack.c.l.b16 %v429
    %v438 = vunpack.c.l.b16 %v430
    %v439 = vunpack.c.l.b16 %v431
    %v440 = vpack.c.b16 %v437, %v436
    %v441 = vpack.c.b16 %v439, %v438
    %444 = vmatpush.bf16.msra.mxu0 0
    %445 = vmatpush.bf16.msra.mxu0 0
    %446 = vmatpush.bf16.msra.mxu0 0
    %447 = vmatpush.bf16.msra.mxu0 0
    %448 = vmatpush.bf16.msra.mxu0 0
    %449 = vmatpush.bf16.msra.mxu0 0
    %450 = vmatpush.bf16.msra.mxu0 %v441
    %451 = vmatpush.bf16.msra.mxu0 %v440
    %452 = vmatmul.bf16.gmra.mxu0 %v199
    %v453 = vpop.f32.mrf.mxu0
    %v454 = vadd.f32 0.0, %v453
    %v455 = vpop.f32.mrf.mxu0
    %456 = vdwg.mxu0
    %v473 = vunpack.c.l.b16 %v412
    %v474 = vunpack.c.l.b16 %v413
    %v475 = vunpack.c.l.b16 %v414
    %v476 = vunpack.c.l.b16 %v415
    %v477 = vunpack.c.l.b16 %v416
    %v478 = vunpack.c.l.b16 %v417
    %v479 = vunpack.c.l.b16 %v418
    %v480 = vunpack.c.l.b16 %v419
    %v481 = vunpack.c.l.b16 %v420
    %v482 = vunpack.c.l.b16 %v421
    %v483 = vunpack.c.l.b16 %v422
    %v484 = vunpack.c.l.b16 %v423
    %v485 = vunpack.c.l.b16 %v424
    %v486 = vunpack.c.l.b16 %v425
    %v487 = vunpack.c.l.b16 %v426
    %v488 = vunpack.c.l.b16 %v427
    %v489 = vpack.c.b16 %v474, %v473
    %v490 = vpack.c.b16 %v476, %v475
    %v491 = vpack.c.b16 %v478, %v477
    %v492 = vpack.c.b16 %v480, %v479
    %v493 = vpack.c.b16 %v482, %v481
    %v494 = vpack.c.b16 %v484, %v483
    %v495 = vpack.c.b16 %v486, %v485
    %v496 = vpack.c.b16 %v488, %v487
    %505 = vmatpush.bf16.msra.mxu0 %v496
    %506 = vmatpush.bf16.msra.mxu0 %v495
    %507 = vmatpush.bf16.msra.mxu0 %v494
    %508 = vmatpush.bf16.msra.mxu0 %v493
    %509 = vmatpush.bf16.msra.mxu0 %v492
    %510 = vmatpush.bf16.msra.mxu0 %v491
    %511 = vmatpush.bf16.msra.mxu0 %v490
    %512 = vmatpush.bf16.msra.mxu0 %v489
    %513 = vmatmul.bf16.gmra.mxu0 %v241
    %v514 = vpop.f32.mrf.mxu0
    %v515 = vadd.f32 %v454, %v514
    %v516 = vpop.f32.mrf.mxu0
    %517 = vdwg.mxu0
    %v518 = vld [vmem:[%s15] sm:$0xf]
    %v519 = vld [vmem:[%s15 + $0x4] sm:$0xf]
    %v520 = vld [vmem:[%s15 + $0x8] sm:$0xf]
    %v521 = vld [vmem:[%s15 + $0xc] sm:$0xf]
    %v526 = vunpack.c.l.b16 %v518
    %v527 = vunpack.c.l.b16 %v519
    %v528 = vunpack.c.l.b16 %v520
    %v529 = vunpack.c.l.b16 %v521
    %v530 = vpack.c.b16 %v527, %v526
    %v531 = vpack.c.b16 %v529, %v528
    %534 = vmatpush.bf16.msra.mxu0 0
    %535 = vmatpush.bf16.msra.mxu0 0
    %536 = vmatpush.bf16.msra.mxu0 0
    %537 = vmatpush.bf16.msra.mxu0 0
    %538 = vmatpush.bf16.msra.mxu0 0
    %539 = vmatpush.bf16.msra.mxu0 0
    %540 = vmatpush.bf16.msra.mxu0 %v531
    %541 = vmatpush.bf16.msra.mxu0 %v530
    %542 = vmatmul.bf16.gmra.mxu0 %v373
    %v543 = vpop.f32.mrf.mxu0
    %v544 = vadd.f32 0.0, %v543
    %v545 = vpop.f32.mrf.mxu0
    %546 = vdwg.mxu0
    %v547 = vadd.f32 %v515, %v544
    %v549 = vperm.slane %v90, 0
    %v551 = vadd.f32 %v547, %v549
    %v552 = vxor.u32 %v551, 2147483648
    %v553 = vmul.f32 %v552, 1.442695
    %v554 = vpow.pop %v553
    %v555 = vadd.f32 %v554, 1.0
    %v556 = vrcp.pop %v555
    %v557 = vmul.f32 %v555, %v556
    %v558 = vsub.f32 1.0, %v557
    %v559 = vmul.f32 %v556, %v558
    %v560 = vadd.f32 %v556, %v559
    %vm561 = vweird.f32 %v555
    %vm562 = vweird.f32 %v556
    %vm563 = vmor %vm561, %vm562
    %v564 = vsel %vm563, %v556, %v560
    %v565 = vand.u32 2147483647, %v555
    %vm566 = vcmp.eq.f32.partialorder %v565, 8.507059e+37
    %v567 = vand.u32 %v555, 2147483648
    %v568 = vor.u32 1.1754944e-38, %v567
    %v569 = vsel %vm566, %v568, %v564
    %v570 = vmul.f32 1.0, %v569
    %v571 = vld [vmem:[%s16] sm:$0xf]
    %v572 = vld [vmem:[%s16 + $0x4] sm:$0xf]
    %v573 = vld [vmem:[%s16 + $0x8] sm:$0xf]
    %v574 = vld [vmem:[%s16 + $0xc] sm:$0xf]
    %v576 = vperm.slane %v92, 0
    %v582 = vunpack.c.l.b16 %v571
    %v583 = vunpack.c.l.b16 %v572
    %v584 = vunpack.c.l.b16 %v573
    %v585 = vunpack.c.l.b16 %v574
    %v586 = vpack.c.b16 %v583, %v582
    %v587 = vpack.c.b16 %v585, %v584
    %590 = vmatpush.bf16.msra.mxu0 0
    %591 = vmatpush.bf16.msra.mxu0 0
    %592 = vmatpush.bf16.msra.mxu0 0
    %593 = vmatpush.bf16.msra.mxu0 0
    %594 = vmatpush.bf16.msra.mxu0 0
    %595 = vmatpush.bf16.msra.mxu0 0
    %596 = vmatpush.bf16.msra.mxu0 %v587
    %597 = vmatpush.bf16.msra.mxu0 %v586
    %598 = vmatmul.bf16.gmra.mxu0 %v373
    %v599 = vpop.f32.mrf.mxu0
    %v600 = vadd.f32 %v576, %v599
    %v601 = vpop.f32.mrf.mxu0
    %602 = vdwg.mxu0
    %v603 = vld [vmem:[%s10] sm:$0xf]
    %v604 = vld [vmem:[%s10 + $0x4] sm:$0xf]
    %v605 = vld [vmem:[%s10 + $0x8] sm:$0xf]
    %v606 = vld [vmem:[%s10 + $0xc] sm:$0xf]
    %v607 = vld [vmem:[%s10 + $0x10] sm:$0xf]
    %v608 = vld [vmem:[%s10 + $0x14] sm:$0xf]
    %v609 = vld [vmem:[%s10 + $0x18] sm:$0xf]
    %v610 = vld [vmem:[%s10 + $0x1c] sm:$0xf]
    %v611 = vld [vmem:[%s10 + $0x20] sm:$0xf]
    %v612 = vld [vmem:[%s10 + $0x24] sm:$0xf]
    %v613 = vld [vmem:[%s10 + $0x28] sm:$0xf]
    %v614 = vld [vmem:[%s10 + $0x2c] sm:$0xf]
    %v615 = vld [vmem:[%s10 + $0x30] sm:$0xf]
    %v616 = vld [vmem:[%s10 + $0x34] sm:$0xf]
    %v617 = vld [vmem:[%s10 + $0x38] sm:$0xf]
    %v618 = vld [vmem:[%s10 + $0x3c] sm:$0xf]
    %v619 = vld [vmem:[%s13] sm:$0xf]
    %v620 = vld [vmem:[%s13 + $0x4] sm:$0xf]
    %v621 = vld [vmem:[%s13 + $0x8] sm:$0xf]
    %v622 = vld [vmem:[%s13 + $0xc] sm:$0xf]
    %v627 = vunpack.c.l.b16 %v619
    %v628 = vunpack.c.l.b16 %v620
    %v629 = vunpack.c.l.b16 %v621
    %v630 = vunpack.c.l.b16 %v622
    %v631 = vpack.c.b16 %v628, %v627
    %v632 = vpack.c.b16 %v630, %v629
    %635 = vmatpush.bf16.msra.mxu0 0
    %636 = vmatpush.bf16.msra.mxu0 0
    %637 = vmatpush.bf16.msra.mxu0 0
    %638 = vmatpush.bf16.msra.mxu0 0
    %639 = vmatpush.bf16.msra.mxu0 0
    %640 = vmatpush.bf16.msra.mxu0 0
    %641 = vmatpush.bf16.msra.mxu0 %v632
    %642 = vmatpush.bf16.msra.mxu0 %v631
    %643 = vmatmul.bf16.gmra.mxu0 %v199
    %v644 = vpop.f32.mrf.mxu0
    %v645 = vadd.f32 0.0, %v644
    %v646 = vpop.f32.mrf.mxu0
    %647 = vdwg.mxu0
    %v664 = vunpack.c.l.b16 %v603
    %v665 = vunpack.c.l.b16 %v604
    %v666 = vunpack.c.l.b16 %v605
    %v667 = vunpack.c.l.b16 %v606
    %v668 = vunpack.c.l.b16 %v607
    %v669 = vunpack.c.l.b16 %v608
    %v670 = vunpack.c.l.b16 %v609
    %v671 = vunpack.c.l.b16 %v610
    %v672 = vunpack.c.l.b16 %v611
    %v673 = vunpack.c.l.b16 %v612
    %v674 = vunpack.c.l.b16 %v613
    %v675 = vunpack.c.l.b16 %v614
    %v676 = vunpack.c.l.b16 %v615
    %v677 = vunpack.c.l.b16 %v616
    %v678 = vunpack.c.l.b16 %v617
    %v679 = vunpack.c.l.b16 %v618
    %v680 = vpack.c.b16 %v665, %v664
    %v681 = vpack.c.b16 %v667, %v666
    %v682 = vpack.c.b16 %v669, %v668
    %v683 = vpack.c.b16 %v671, %v670
    %v684 = vpack.c.b16 %v673, %v672
    %v685 = vpack.c.b16 %v675, %v674
    %v686 = vpack.c.b16 %v677, %v676
    %v687 = vpack.c.b16 %v679, %v678
    %696 = vmatpush.bf16.msra.mxu0 %v687
    %697 = vmatpush.bf16.msra.mxu0 %v686
    %698 = vmatpush.bf16.msra.mxu0 %v685
    %699 = vmatpush.bf16.msra.mxu0 %v684
    %700 = vmatpush.bf16.msra.mxu0 %v683
    %701 = vmatpush.bf16.msra.mxu0 %v682
    %702 = vmatpush.bf16.msra.mxu0 %v681
    %703 = vmatpush.bf16.msra.mxu0 %v680
    %704 = vmatmul.bf16.gmra.mxu0 %v241
    %v705 = vpop.f32.mrf.mxu0
    %v706 = vadd.f32 %v645, %v705
    %v707 = vpop.f32.mrf.mxu0
    %708 = vdwg.mxu0
    %v710 = vperm.slane %v91, 0
    %v712 = vadd.f32 %v706, %v710
    %v713 = vmul.f32 %v411, %v600
    %v714 = vadd.f32 %v712, %v713
    %v715 = vtanh.pop %v714
    %v716 = vsub.f32 1.0, %v570
    %v717 = vmul.f32 %v716, %v715
    %v718 = vmul.f32 %v570, %v248
    %v719 = vadd.f32 %v717, %v718
    %720 = vst.msk [vmem:[#allocation4] sm:$0xff] %vm197, %v719
    %v721 = vsel %vm197, %v719, 0.0
    %722 = vadd.xlane.f32.xlu0 %v721
    %v723 = vpop.xlane.xlu0 %722
    %v724 = vrcp.pop 32.0
    %v725 = vmul.f32 32.0, %v724
    %v726 = vsub.f32 1.0, %v725
    %v727 = vmul.f32 %v724, %v726
    %v728 = vadd.f32 %v724, %v727
    %vm729 = vweird.f32 %v724
    %v730 = vsel %vm729, %v724, %v728
    %v731 = vmul.f32 %v723, %v730
    %v732 = vsub.f32 %v719, %v731
    %v733 = vmul.f32 %v732, %v732
    %v734 = vsel %vm197, %v733, 0.0
    %735 = vadd.xlane.f32.xlu0 %v734
    %v736 = vpop.xlane.xlu0 %735
    %v737 = vmul.f32 %v736, %v730
    %v738 = vadd.f32 %v737, 1e-05
    %v739 = vrsqrt.pop %v738
    %v740 = vmul.f32 %v739, %v738
    %v741 = vmul.f32 %v740, %v739
    %v742 = vmul.f32 0.5, %v741
    %v743 = vsub.f32 1.5, %v742
    %v744 = vmul.f32 %v739, %v743
    %vm745 = vweird.f32 %v738
    %vm746 = vweird.f32 %v739
    %vm747 = vmor %vm745, %vm746
    %v748 = vsel %vm747, %v739, %v744
    %v749 = vmul.f32 %v732, %v748
    %v751 = vperm.slane %v93, 0
    %v753 = vmul.f32 %v749, %v751
    %v755 = vperm.slane %v94, 0
    %v757 = vadd.f32 %v753, %v755
    %v758 = vpack.c.bf16 %v757, %v757
    %v759 = vld [vmem:[%s23] sm:$0xf]
    %v760 = vld [vmem:[%s23 + $0x4] sm:$0xf]
    %v761 = vld [vmem:[%s23 + $0x8] sm:$0xf]
    %v762 = vld [vmem:[%s23 + $0xc] sm:$0xf]
    %v764 = vperm.slane %v95, 0
    %v770 = vunpack.c.l.b16 %v759
    %v771 = vunpack.c.l.b16 %v760
    %v772 = vunpack.c.l.b16 %v761
    %v773 = vunpack.c.l.b16 %v762
    %v774 = vpack.c.b16 %v771, %v770
    %v775 = vpack.c.b16 %v773, %v772
    %v779 = vsel %vm197, %v758, 0
    %781 = vmatpush.bf16.msra.mxu0 0
    %782 = vmatpush.bf16.msra.mxu0 0
    %783 = vmatpush.bf16.msra.mxu0 0
    %784 = vmatpush.bf16.msra.mxu0 0
    %785 = vmatpush.bf16.msra.mxu0 0
    %786 = vmatpush.bf16.msra.mxu0 0
    %787 = vmatpush.bf16.msra.mxu0 %v775
    %788 = vmatpush.bf16.msra.mxu0 %v774
    %789 = vmatmul.bf16.gmra.mxu0 %v779
    %v790 = vpop.f32.mrf.mxu0
    %v791 = vadd.f32 %v764, %v790
    %v792 = vpop.f32.mrf.mxu0
    %793 = vdwg.mxu0
    %794 = vmax.xlane.f32.xlu0 %v791
    %v795 = vpop.xlane.xlu0 %794
    %v796 = vlaneseq
    %v797 = vand.u32 %v796, 127
    %v798 = vcvt.s32.f32 %v797
    %vm799 = vcmp.eq.f32.partialorder %v791, %v795
    %v800 = vsel %vm799, %v798, 128.0
    %801 = vmin.xlane.f32.xlu0 %v800
    %v802 = vpop.xlane.xlu0 %801
    %v803 = vsub.f32 %v791, %v795
    %v804 = vmul.f32 %v803, 1.442695
    %v805 = vpow.pop %v804
    %806 = vadd.xlane.f32.xlu0 %v805
    %v807 = vpop.xlane.xlu0 %806
    %v808 = vlog2.pop %v807
    %v809 = vmul.f32 %v808, 0.6931472
    %v810 = vsub.f32 0.0, %v809
    %vm811 = vcmp.eq.s32.totalorder %v797, 0
    %vm812 = vcmp.eq.s32.totalorder %v797, 1
    %v813 = vsel %vm812, %v810, 0.0
    %v814 = vsel %vm811, %v802, %v813
    %815 = vst [vmem:[#allocation2] sm:$0xff] %v814
    // Predicated region
    $region102: #{tpu_custom_call.1} parent=1 // pred_check
      _
    $region103: #{tpu_custom_call.1} parent=1 // pred_check_branch
      %817 = sbr.rel (0) target = $region105
    $region104: #{tpu_custom_call.1} parent=1 // pred_region
      %819 = vsyncadd [#allocation3], 0
      %s821 = sshll.u32 [#allocation2], 4
      %s822 = int_to_ptr.vmem [resolvable:$true] %s821
      %s823 = sshll.u32 %s25, 4
      %s824 = int_to_ptr.hbm [resolvable:$true] %s823
      %826 = dma.vmem_to_hbm [thread:$0]  %s822, 128, %s824, [#allocation3]
    $region105: #{tpu_custom_call.1} parent=1 // pred_fallthru
      _
    // Predicated region
    $region106: #{tpu_custom_call.1} parent=1 // pred_check
      _
    $region107: #{tpu_custom_call.1} parent=1 // pred_check_branch
      %828 = sbr.rel (0) target = $region109
    $region108: #{tpu_custom_call.1} parent=1 // pred_region
      %830 = vsyncadd [#allocation5], 0
      %s832 = sshll.u32 [#allocation4], 4
      %s833 = int_to_ptr.vmem [resolvable:$true] %s832
      %s834 = sshll.u32 %s26, 4
      %s835 = int_to_ptr.hbm [resolvable:$true] %s834
      %837 = dma.vmem_to_hbm [thread:$0]  %s833, 128, %s835, [#allocation5]
    $region109: #{tpu_custom_call.1} parent=1 // pred_fallthru
      _
    // Predicated region
    $region110: #{tpu_custom_call.1} parent=1 // pred_check
      _
    $region111: #{tpu_custom_call.1} parent=1 // pred_check_branch
      %839 = sbr.rel (0) target = $region113
    $region112: #{tpu_custom_call.1} parent=1 // pred_region
      %841 = dma.done [#allocation3], 128
    $region113: #{tpu_custom_call.1} parent=1 // pred_fallthru
      _
    // Predicated region
    $region114: #{tpu_custom_call.1} parent=1 // pred_check
      _
    $region115: #{tpu_custom_call.1} parent=1 // pred_check_branch
      %843 = sbr.rel (0) target = $region117
    $region116: #{tpu_custom_call.1} parent=1 // pred_region
      %845 = dma.done [#allocation5], 128
    $region117: #{tpu_custom_call.1} parent=1 // pred_fallthru
      _
    %846 = vsyncpa [#allocation3], 1
    %847 = vsyncpa [#allocation5], 1

</llo_original>
